<compile_context>
chip_gen: v6e
topology: v6e:2x2x1
jax: 0.10.0
libtpu: 0.0.40
codegen_flags: <defaults>
</compile_context>

<pallas_src>
import functools

import jax
import jax.numpy as jnp
from jax.experimental import pallas as pl
from jax.experimental.pallas import tpu as pltpu

_SUBLANE = 8  # batch tile must be a multiple of the sublane width


def _round_up(n: int, m: int) -> int:
    return ((n + m - 1) // m) * m


def _cdiv(a: int, b: int) -> int:
    return (a + b - 1) // b


def _mlp_kernel(x_ref, w1_ref, b1_ref, w2_ref, b2_ref, out_ref):
    """Fused Linear -> ReLU -> Linear on VMEM-resident blocks.

    Used both as the no-grid single-shot body (whole arrays resident) and as
    the per-batch-tile body of the batch-tiled grid (weights are full-array
    blocks with a constant index_map in either case).
    """
    # MXU-input policy: feed both matmuls in the weight dtype (no-op for f32
    # weights; deliberate bf16 downcast if weights are stored bf16 on
    # v6e/v7x, where the MXU is bf16-native).  Accumulation stays f32.
    w1 = w1_ref[...]
    h = jnp.dot(x_ref[...].astype(w1.dtype), w1,
                preferred_element_type=jnp.float32)
    # Bias + ReLU on the VPU; b1 is a (1, H) row, single broadcast add.
    h = jnp.maximum(h + b1_ref[...], 0.0)

    w2 = w2_ref[...]
    o = jnp.dot(h.astype(w2.dtype), w2, preferred_element_type=jnp.float32)
    out_ref[...] = (o + b2_ref[...]).astype(out_ref.dtype)


@functools.partial(jax.jit, static_argnames=("block_batch", "core_parallel"))
def neural_net_forward(x, w1, b1, w2, b2, *, block_batch: int = 1024,
                       core_parallel: bool = False):
    """Forward pass of NeuralNet: ReLU(x @ w1 + b1) @ w2 + b2.

    x:  (batch, input_size)
    w1: (input_size, hidden)       b1: (1, hidden)      (or (hidden,))
    w2: (hidden, num_classes)      b2: (1, num_classes) (or (num_classes,))

    core_parallel=True requests CORE_PARALLEL codegen for the batch grid axis
    (v7x, 2 TensorCores per chip).  Leave False on single-TC v5e/v6e.
    """
    batch, input_size = x.shape
    hidden = w1.shape[1]
    num_classes = w2.shape[1]

    # Biases as (1, F) rows.  init_params already returns them 2-D, so under
    # jit this branch is a no-op (ndim is static) and no per-call reshape op
    # is emitted.
    b1_2d = b1 if b1.ndim == 2 else b1.reshape(1, hidden)
    b2_2d = b2 if b2.ndim == 2 else b2.reshape(1, num_classes)

    if batch <= block_batch:
        # Small batch: whole problem is tiny -- no grid, no software-pipeline
        # setup; everything VMEM-resident, one kernel invocation, no padding.
        return pl.pallas_call(
            _mlp_kernel,
            out_shape=jax.ShapeDtypeStruct((batch, num_classes), x.dtype),
            in_specs=[pl.BlockSpec(memory_space=pltpu.MemorySpace.VMEM)] * 5,
            out_specs=pl.BlockSpec(memory_space=pltpu.MemorySpace.VMEM),
        )(x, w1, b1_2d, w2, b2_2d)

    # --- batch-tiled path -------------------------------------------------
    # Adaptive tile: n_tiles blocks of TM = round_up(cdiv(batch, n_tiles), 8)
    # rows, so at most 8*n_tiles-1 padded rows (vs up to block_batch-1 with a
    # naive round-up), and zero pad/slice when batch divides evenly.
    n_tiles = _cdiv(batch, block_batch)
    tm = _round_up(_cdiv(batch, n_tiles), _SUBLANE)
    padded_batch = tm * n_tiles

    x_in = x if padded_batch == batch else jnp.pad(
        x, ((0, padded_batch - batch), (0, 0)))

    batch_sem = pltpu.CORE_PARALLEL if core_parallel else pltpu.PARALLEL

    out_p = pl.pallas_call(
        _mlp_kernel,
        out_shape=jax.ShapeDtypeStruct((padded_batch, num_classes), x.dtype),
        grid_spec=pltpu.PrefetchScalarGridSpec(
            num_scalar_prefetch=0,
            grid=(n_tiles,),
            in_specs=[
                # x streams one batch tile per step (auto double-buffered DMA).
                pl.BlockSpec((tm, input_size), lambda i: (i, 0)),
                # Weights / biases: full-array blocks, constant index_map ->
                # fetched once, VMEM-resident across the whole grid.
                pl.BlockSpec((input_size, hidden), lambda i: (0, 0)),
                pl.BlockSpec((1, hidden), lambda i: (0, 0)),
                pl.BlockSpec((hidden, num_classes), lambda i: (0, 0)),
                pl.BlockSpec((1, num_classes), lambda i: (0, 0)),
            ],
            out_specs=pl.BlockSpec((tm, num_classes), lambda i: (i, 0)),
        ),
        compiler_params=pltpu.CompilerParams(
            dimension_semantics=(batch_sem,)),
    )(x_in, w1, b1_2d, w2, b2_2d)

    return out_p if padded_batch == batch else out_p[:batch]


def init_params(key, input_size, hidden_size, num_classes, dtype=jnp.float32):
    """Deterministic init mirroring PyTorch nn.Linear default:
    uniform(-1/sqrt(fan_in), 1/sqrt(fan_in)).

    Weights are stored as (in, out); biases are stored as (1, out) so the
    forward never reshapes/pads parameters per call.  dtype=jnp.bfloat16 is
    the MXU-native option on v6e/v7x; f32 kept here to match the PyTorch f32
    reference.
    """
    k1, k2, k3, k4 = jax.random.split(key, 4)
    bound1 = 1.0 / jnp.sqrt(jnp.array(input_size, jnp.float32))
    bound2 = 1.0 / jnp.sqrt(jnp.array(hidden_size, jnp.float32))
    w1 = jax.random.uniform(k1, (input_size, hidden_size), dtype,
                            minval=-bound1, maxval=bound1)
    b1 = jax.random.uniform(k2, (1, hidden_size), dtype,
                            minval=-bound1, maxval=bound1)
    w2 = jax.random.uniform(k3, (hidden_size, num_classes), dtype,
                            minval=-bound2, maxval=bound2)
    b2 = jax.random.uniform(k4, (1, num_classes), dtype,
                            minval=-bound2, maxval=bound2)
    return w1, b1, w2, b2


def _reference(x, w1, b1, w2, b2):
    h = jnp.maximum(
        jnp.dot(x, w1, precision=jax.lax.Precision.HIGHEST) + b1, 0.0)
    return jnp.dot(h, w2, precision=jax.lax.Precision.HIGHEST) + b2


if __name__ == "__main__":
    input_size, hidden_size, num_classes = 32, 64, 16
    key = jax.random.PRNGKey(0)
    kx, kparam, kx2, kx3 = jax.random.split(key, 4)
    w1, b1, w2, b2 = init_params(kparam, input_size, hidden_size, num_classes)

    # 1) Small batch: exercises the no-grid, fully VMEM-resident path
    #    (unpadded 32/64/16 feature widths).
    batch = 8
    x = jax.random.normal(kx, (batch, input_size), dtype=jnp.float32)
    out = jax.block_until_ready(neural_net_forward(x, w1, b1, w2, b2))
    ref = _reference(x, w1, b1, w2, b2)
    assert out.shape == (batch, num_classes)
    assert jnp.allclose(out, ref, atol=1e-4, rtol=1e-4)

    # 2) Larger batch, evenly divisible: batch-tiled grid path with zero
    #    padding / slicing (grid=(2,), TM=1024, weights VMEM-resident).
    big_batch = 2048
    x_big = jax.random.normal(kx2, (big_batch, input_size), dtype=jnp.float32)
    out_big = jax.block_until_ready(
        neural_net_forward(x_big, w1, b1, w2, b2, block_batch=1024))
    ref_big = _reference(x_big, w1, b1, w2, b2)
    assert out_big.shape == (big_batch, num_classes)
    assert jnp.allclose(out_big, ref_big, atol=1e-4, rtol=1e-4)

    # 3) Ragged batch: adaptive TM (n_tiles=2, TM=504, 8 padded rows only),
    #    exercises the tiny-pad + slice remainder handling.
    rag_batch = 1000
    x_rag = jax.random.normal(kx3, (rag_batch, input_size), dtype=jnp.float32)
    out_rag = jax.block_until_ready(
        neural_net_forward(x_rag, w1, b1, w2, b2, block_batch=512))
    ref_rag = _reference(x_rag, w1, b1, w2, b2)
    assert out_rag.shape == (rag_batch, num_classes)
    assert jnp.allclose(out_rag, ref_rag, atol=1e-4, rtol=1e-4)

    print("KERNEL_OK")
</pallas_src>

<mosaic_0001>
module attributes {stable_mosaic.version = 11 : i64} {
  func.func @_mlp_kernel(%arg0: memref<8x32xf32, #tpu.memory_space<vmem>>, %arg1: memref<32x64xf32, #tpu.memory_space<vmem>>, %arg2: memref<1x64xf32, #tpu.memory_space<vmem>>, %arg3: memref<64x16xf32, #tpu.memory_space<vmem>>, %arg4: memref<1x16xf32, #tpu.memory_space<vmem>>, %arg5: memref<8x16xf32, #tpu.memory_space<vmem>>) attributes {dimension_semantics = [], scalar_prefetch = 0 : i64, scratch_operands = 0 : i64, tpu.core_type = #tpu.core_type<tc>} {
    %c0 = arith.constant 0 : index
    %c0_0 = arith.constant 0 : index
    %0 = vector.load %arg1[%c0, %c0_0] : memref<32x64xf32, #tpu.memory_space<vmem>>, vector<32x64xf32>
    %c0_1 = arith.constant 0 : index
    %c0_2 = arith.constant 0 : index
    %1 = vector.load %arg0[%c0_1, %c0_2] : memref<8x32xf32, #tpu.memory_space<vmem>>, vector<8x32xf32>
    %cst = arith.constant dense<0.000000e+00> : vector<8x64xf32>
    %2 = tpu.matmul %1, %0, %cst {dimension_numbers = #tpu.dot_dimension_numbers<[1], [0], [0], [1], [0, 0, 1, 1], [], []>} : vector<8x32xf32>, vector<32x64xf32>, vector<8x64xf32> -> vector<8x64xf32>
    %c0_3 = arith.constant 0 : index
    %c0_4 = arith.constant 0 : index
    %3 = vector.load %arg2[%c0_3, %c0_4] : memref<1x64xf32, #tpu.memory_space<vmem>>, vector<1x64xf32>
    %4 = vector.broadcast %3 : vector<1x64xf32> to vector<8x64xf32>
    %5 = arith.addf %2, %4 : vector<8x64xf32>
    %cst_5 = arith.constant 0.000000e+00 : f32
    %6 = vector.broadcast %cst_5 : f32 to vector<8x64xf32>
    %7 = arith.maximumf %5, %6 : vector<8x64xf32>
    %c0_6 = arith.constant 0 : index
    %c0_7 = arith.constant 0 : index
    %8 = vector.load %arg3[%c0_6, %c0_7] : memref<64x16xf32, #tpu.memory_space<vmem>>, vector<64x16xf32>
    %cst_8 = arith.constant dense<0.000000e+00> : vector<8x16xf32>
    %9 = tpu.matmul %7, %8, %cst_8 {dimension_numbers = #tpu.dot_dimension_numbers<[1], [0], [0], [1], [0, 0, 1, 1], [], []>} : vector<8x64xf32>, vector<64x16xf32>, vector<8x16xf32> -> vector<8x16xf32>
    %c0_9 = arith.constant 0 : index
    %c0_10 = arith.constant 0 : index
    %10 = vector.load %arg4[%c0_9, %c0_10] : memref<1x16xf32, #tpu.memory_space<vmem>>, vector<1x16xf32>
    %11 = vector.broadcast %10 : vector<1x16xf32> to vector<8x16xf32>
    %12 = arith.addf %9, %11 : vector<8x16xf32>
    %c0_11 = arith.constant 0 : index
    %c0_12 = arith.constant 0 : index
    %13 = vector.load %arg5[%c0_11, %c0_12] : memref<8x16xf32, #tpu.memory_space<vmem>>, vector<8x16xf32>
    tpu.vector_store %arg5[%c0_11, %c0_12], %12 {strides = array<i32>} : memref<8x16xf32, #tpu.memory_space<vmem>>, vector<8x16xf32>,
    return
  }
}

</mosaic_0001>

<llo_original>
// kernel: neural_net_forward.1
$region0: #{neural_net_forward.1}
  #allocation0 [shape = 'u32[]', space=smem, size = 0x4, offset = 0x4, fixed_abs, tag = 'smem constant byte address 0x4 - core index']
  #allocation1 [shape = 'u32[144,128]{1,0:T(1,128)}', space=vmem, size = 0x12000, scoped, tag = 'internal scratch']
  %s0 = inlined_call_operand.vmem [shape: f32[8,32], index: 0, kind: input, shape index: {}]
  %s1 = inlined_call_operand.vmem [shape: f32[32,64], index: 1, kind: input, shape index: {}]
  %s2 = inlined_call_operand.vmem [shape: f32[1,64], index: 2, kind: input, shape index: {}]
  %s3 = inlined_call_operand.vmem [shape: f32[64,16], index: 3, kind: input, shape index: {}]
  %s4 = inlined_call_operand.vmem [shape: f32[1,16], index: 4, kind: input, shape index: {}]
  %s5 = inlined_call_operand.hbm [shape: f32[8,16], index: 5, kind: output, shape index: {}]
  %s6 = sld [smem:[#allocation0]]
  $region30: #{neural_net_forward.1} parent=0
    _
  %s8 = ssub.s32 1, %s6
  %s9 = scalar_select 0, %s8, %s6
  $region1: #{neural_net_forward.1} parent=0
    #allocation2 [shape = 'u8[4096]{0}', space=vmem, size = 0x1000, scoped, tag = 'output window, operand 0, single buffered']
    #allocation3 [shape = 's32[1]{0}', space=sflag, size = 0x4, scoped, tag = 'scoped memory for neural_net_forward.1']
    %10 = vsyncpa [#allocation3], 0
    // Predicated region
    $region2: #{neural_net_forward.1} parent=1 // pred_check
      _
    $region3: #{neural_net_forward.1} parent=1 // pred_check_branch
      %12 = sbr.rel (0) target = $region5
    $region4: #{neural_net_forward.1} parent=1 // pred_region
      _
    $region5: #{neural_net_forward.1} parent=1 // pred_fallthru
      _
    // Predicated region
    $region6: #{neural_net_forward.1} parent=1 // pred_check
      _
    $region7: #{neural_net_forward.1} parent=1 // pred_check_branch
      %14 = sbr.rel (0) target = $region9
    $region8: #{neural_net_forward.1} parent=1 // pred_region
      _
    $region9: #{neural_net_forward.1} parent=1 // pred_fallthru
      _
    // Predicated region
    $region10: #{neural_net_forward.1} parent=1 // pred_check
      _
    $region11: #{neural_net_forward.1} parent=1 // pred_check_branch
      %16 = sbr.rel (0) target = $region13
    $region12: #{neural_net_forward.1} parent=1 // pred_region
      _
    $region13: #{neural_net_forward.1} parent=1 // pred_fallthru
      _
    // Predicated region
    $region14: #{neural_net_forward.1} parent=1 // pred_check
      _
    $region15: #{neural_net_forward.1} parent=1 // pred_check_branch
      %18 = sbr.rel (0) target = $region17
    $region16: #{neural_net_forward.1} parent=1 // pred_region
      _
    $region17: #{neural_net_forward.1} parent=1 // pred_fallthru
      _
    // Predicated region
    $region18: #{neural_net_forward.1} parent=1 // pred_check
      _
    $region19: #{neural_net_forward.1} parent=1 // pred_check_branch
      %20 = sbr.rel (0) target = $region21
    $region20: #{neural_net_forward.1} parent=1 // pred_region
      _
    $region21: #{neural_net_forward.1} parent=1 // pred_fallthru
      _
    %v21 = vld [vmem:[%s1] sm:$0xff]
    %v22 = vld [vmem:[%s1 + $0x8] sm:$0xff]
    %v23 = vld [vmem:[%s1 + $0x10] sm:$0xff]
    %v24 = vld [vmem:[%s1 + $0x18] sm:$0xff]
    %v25 = vld [vmem:[%s0] sm:$0xff]
    %v26 = vld [vmem:[%s2] sm:$0x1]
    %v28 = vlaneseq
    %v29 = vshrl.u32 %v28, 7
    %v30 = vsub.s32 0, %v29
    %v31 = vrot.slane %v26, %v30
    %vm33 = vcmask 261120
    %v35 = vsel %vm33, %v25, 0
    %37 = vmatprep.subr.mxu0 0.0
    %38 = vmatpush1.msra.mxu0 0.0
    %39 = vmatprep.subr.mxu0 0.0
    %40 = vmatpush1.msra.mxu0 0.0
    %41 = vmatprep.subr.mxu0 0.0
    %42 = vmatpush1.msra.mxu0 0.0
    %43 = vmatprep.subr.mxu0 0.0
    %44 = vmatpush1.msra.mxu0 0.0
    %45 = vmatprep.subr.mxu0 0.0
    %46 = vmatpush1.msra.mxu0 0.0
    %47 = vmatprep.subr.mxu0 0.0
    %48 = vmatpush1.msra.mxu0 0.0
    %49 = vmatprep.subr.mxu0 0.0
    %50 = vmatpush1.msra.mxu0 0.0
    %51 = vmatprep.subr.mxu0 0.0
    %52 = vmatpush1.msra.mxu0 0.0
    %53 = vmatprep.subr.mxu0 0.0
    %54 = vmatpush1.msra.mxu0 0.0
    %55 = vmatprep.subr.mxu0 0.0
    %56 = vmatpush1.msra.mxu0 0.0
    %57 = vmatprep.subr.mxu0 0.0
    %58 = vmatpush1.msra.mxu0 0.0
    %59 = vmatprep.subr.mxu0 0.0
    %60 = vmatpush1.msra.mxu0 0.0
    %61 = vmatprep.subr.mxu0 0.0
    %62 = vmatpush1.msra.mxu0 %v24
    %63 = vmatprep.subr.mxu0 0.0
    %64 = vmatpush1.msra.mxu0 %v23
    %65 = vmatprep.subr.mxu0 0.0
    %66 = vmatpush1.msra.mxu0 %v22
    %67 = vmatprep.subr.mxu0 0.0
    %68 = vmatpush1.msra.mxu0 %v21
    %69 = vmatprep.subr.mxu0 0.0
    %70 = vmatpush2.msra.mxu0 0.0
    %71 = vmatprep.subr.mxu0 0.0
    %72 = vmatpush2.msra.mxu0 0.0
    %73 = vmatprep.subr.mxu0 0.0
    %74 = vmatpush2.msra.mxu0 0.0
    %75 = vmatprep.subr.mxu0 0.0
    %76 = vmatpush2.msra.mxu0 0.0
    %77 = vmatprep.subr.mxu0 0.0
    %78 = vmatpush2.msra.mxu0 0.0
    %79 = vmatprep.subr.mxu0 0.0
    %80 = vmatpush2.msra.mxu0 0.0
    %81 = vmatprep.subr.mxu0 0.0
    %82 = vmatpush2.msra.mxu0 0.0
    %83 = vmatprep.subr.mxu0 0.0
    %84 = vmatpush2.msra.mxu0 0.0
    %85 = vmatprep.subr.mxu0 0.0
    %86 = vmatpush2.msra.mxu0 0.0
    %87 = vmatprep.subr.mxu0 0.0
    %88 = vmatpush2.msra.mxu0 0.0
    %89 = vmatprep.subr.mxu0 0.0
    %90 = vmatpush2.msra.mxu0 0.0
    %91 = vmatprep.subr.mxu0 0.0
    %92 = vmatpush2.msra.mxu0 0.0
    %93 = vmatprep.subr.mxu0 0.0
    %94 = vmatpush2.msra.mxu0 0.0
    %95 = vmatprep.subr.mxu0 0.0
    %96 = vmatpush2.msra.mxu0 0.0
    %97 = vmatprep.subr.mxu0 0.0
    %98 = vmatpush2.msra.mxu0 0.0
    %99 = vmatprep.subr.mxu0 0.0
    %100 = vmatpush2.msra.mxu0 0.0
    %101 = vmatprep.mubr.f32.mxu0 0.0
    %102 = vmatmul.mubr.f32.gmra.mxu0 %v35
    %v103 = vpop.f32.mrf.mxu0
    %v104 = vadd.f32 %v31, %v103
    %v105 = vpop.f32.mrf.mxu0
    %106 = vdwg.mxu0
    %v107 = vmax.f32 %v104, 0.0
    %v108 = vld [vmem:[%s3] sm:$0xff]
    %v109 = vld [vmem:[%s3 + $0x8] sm:$0xff]
    %v110 = vld [vmem:[%s3 + $0x10] sm:$0xff]
    %v111 = vld [vmem:[%s3 + $0x18] sm:$0xff]
    %v112 = vld [vmem:[%s3 + $0x20] sm:$0xff]
    %v113 = vld [vmem:[%s3 + $0x28] sm:$0xff]
    %v114 = vld [vmem:[%s3 + $0x30] sm:$0xff]
    %v115 = vld [vmem:[%s3 + $0x38] sm:$0xff]
    %v116 = vld [vmem:[%s4] sm:$0x1]
    %v118 = vlaneseq
    %v119 = vshrl.u32 %v118, 7
    %v120 = vsub.s32 0, %v119
    %v121 = vrot.slane %v116, %v120
    %vm123 = vcmask 523264
    %v125 = vsel %vm123, %v107, 0
    %127 = vmatprep.subr.mxu0 0.0
    %128 = vmatpush1.msra.mxu0 0.0
    %129 = vmatprep.subr.mxu0 0.0
    %130 = vmatpush1.msra.mxu0 0.0
    %131 = vmatprep.subr.mxu0 0.0
    %132 = vmatpush1.msra.mxu0 0.0
    %133 = vmatprep.subr.mxu0 0.0
    %134 = vmatpush1.msra.mxu0 0.0
    %135 = vmatprep.subr.mxu0 0.0
    %136 = vmatpush1.msra.mxu0 0.0
    %137 = vmatprep.subr.mxu0 0.0
    %138 = vmatpush1.msra.mxu0 0.0
    %139 = vmatprep.subr.mxu0 0.0
    %140 = vmatpush1.msra.mxu0 0.0
    %141 = vmatprep.subr.mxu0 0.0
    %142 = vmatpush1.msra.mxu0 0.0
    %143 = vmatprep.subr.mxu0 0.0
    %144 = vmatpush1.msra.mxu0 %v115
    %145 = vmatprep.subr.mxu0 0.0
    %146 = vmatpush1.msra.mxu0 %v114
    %147 = vmatprep.subr.mxu0 0.0
    %148 = vmatpush1.msra.mxu0 %v113
    %149 = vmatprep.subr.mxu0 0.0
    %150 = vmatpush1.msra.mxu0 %v112
    %151 = vmatprep.subr.mxu0 0.0
    %152 = vmatpush1.msra.mxu0 %v111
    %153 = vmatprep.subr.mxu0 0.0
    %154 = vmatpush1.msra.mxu0 %v110
    %155 = vmatprep.subr.mxu0 0.0
    %156 = vmatpush1.msra.mxu0 %v109
    %157 = vmatprep.subr.mxu0 0.0
    %158 = vmatpush1.msra.mxu0 %v108
    %159 = vmatprep.subr.mxu0 0.0
    %160 = vmatpush2.msra.mxu0 0.0
    %161 = vmatprep.subr.mxu0 0.0
    %162 = vmatpush2.msra.mxu0 0.0
    %163 = vmatprep.subr.mxu0 0.0
    %164 = vmatpush2.msra.mxu0 0.0
    %165 = vmatprep.subr.mxu0 0.0
    %166 = vmatpush2.msra.mxu0 0.0
    %167 = vmatprep.subr.mxu0 0.0
    %168 = vmatpush2.msra.mxu0 0.0
    %169 = vmatprep.subr.mxu0 0.0
    %170 = vmatpush2.msra.mxu0 0.0
    %171 = vmatprep.subr.mxu0 0.0
    %172 = vmatpush2.msra.mxu0 0.0
    %173 = vmatprep.subr.mxu0 0.0
    %174 = vmatpush2.msra.mxu0 0.0
    %175 = vmatprep.subr.mxu0 0.0
    %176 = vmatpush2.msra.mxu0 0.0
    %177 = vmatprep.subr.mxu0 0.0
    %178 = vmatpush2.msra.mxu0 0.0
    %179 = vmatprep.subr.mxu0 0.0
    %180 = vmatpush2.msra.mxu0 0.0
    %181 = vmatprep.subr.mxu0 0.0
    %182 = vmatpush2.msra.mxu0 0.0
    %183 = vmatprep.subr.mxu0 0.0
    %184 = vmatpush2.msra.mxu0 0.0
    %185 = vmatprep.subr.mxu0 0.0
    %186 = vmatpush2.msra.mxu0 0.0
    %187 = vmatprep.subr.mxu0 0.0
    %188 = vmatpush2.msra.mxu0 0.0
    %189 = vmatprep.subr.mxu0 0.0
    %190 = vmatpush2.msra.mxu0 0.0
    %191 = vmatprep.mubr.f32.mxu0 0.0
    %192 = vmatmul.mubr.f32.gmra.mxu0 %v125
    %v193 = vpop.f32.mrf.mxu0
    %v194 = vadd.f32 %v121, %v193
    %v195 = vpop.f32.mrf.mxu0
    %196 = vdwg.mxu0
    %vm197 = vcmask 130048
    %198 = vst.msk [vmem:[#allocation2] sm:$0xff] %vm197, %v194
    // Predicated region
    $region22: #{neural_net_forward.1} parent=1 // pred_check
      _
    $region23: #{neural_net_forward.1} parent=1 // pred_check_branch
      %200 = sbr.rel (0) target = $region25
    $region24: #{neural_net_forward.1} parent=1 // pred_region
      %s202 = ssub.s32 128, 128
      %203 = vsyncadd [#allocation3], %s202
      %s205 = sshll.u32 [#allocation2], 4
      %s206 = int_to_ptr.vmem [resolvable:$true] %s205
      %208 = dma.vmem_to_hbm [thread:$0]  %s206, 128, %s5, [#allocation3]
    $region25: #{neural_net_forward.1} parent=1 // pred_fallthru
      _
    // Predicated region
    $region26: #{neural_net_forward.1} parent=1 // pred_check
      _
    $region27: #{neural_net_forward.1} parent=1 // pred_check_branch
      %210 = sbr.rel (0) target = $region29
    $region28: #{neural_net_forward.1} parent=1 // pred_region
      %211 = dma.done [#allocation3], 128
    $region29: #{neural_net_forward.1} parent=1 // pred_fallthru
      _
    %212 = vsyncpa [#allocation3], 1

</llo_original>
